<compile_context>
chip_gen: v7x
topology: tpu7x:2x2x1
jax: 0.10.0
libtpu: 0.0.40
codegen_flags: <defaults>
</compile_context>

<pallas_src>
import functools

import jax
import jax.numpy as jnp
from jax.experimental import pallas as pl
from jax.experimental.pallas import tpu as pltpu


def ulip_block_kernel(scale_ref, sk_ref, img_ref, pc_ref, txt_ref, out_ref,
                      *, use_bf16_matmul=True):
    """One grid step k handles one (other_k, sketch) contrastive pair.

    k == 0 -> image, k == 1 -> pc, k == 2 -> text.
    Writes [loss_k, acc_k] into out_ref[0, 0, 0:2].
    """
    k = pl.program_id(0)
    b, _ = sk_ref.shape
    scale = scale_ref[0]

    # Select the raw "other" embedding for this block.  All three stay resident
    # in VMEM (constant block index); the two selects are O(B*D) VPU work,
    # negligible next to the O(B^2*D) matmul, and avoid any HBM concat pass.
    other = jnp.where(k == 0, img_ref[...],
                      jnp.where(k == 1, pc_ref[...], txt_ref[...]))
    other = other.astype(jnp.float32)
    sk = sk_ref[...].astype(jnp.float32)

    # F.normalize(p=2, eps=1e-12): x / max(||x||, eps) == x * rsqrt(max(||x||^2, eps^2)).
    def l2_normalize(x):
        sumsq = jnp.sum(x * x, axis=-1, keepdims=True)
        return x * jax.lax.rsqrt(jnp.maximum(sumsq, 1e-24))

    sk_n = l2_normalize(sk) * scale          # fold logit_scale into sketch once
    other_n = l2_normalize(other)

    mm_dtype = jnp.bfloat16 if use_bf16_matmul else jnp.float32
    sk_mm = sk_n.astype(mm_dtype)
    other_mm = other_n.astype(mm_dtype)

    # L[i, j] = logit_scale * other_k[i] . sketch[j]  ==  logits_per_{other_k}_sketch
    # L.T     ==  logits_per_sketch_{other_k}
    L = jnp.dot(other_mm, sk_mm.T, preferred_element_type=jnp.float32)   # (B, B) f32

    # Row-wise logsumexp: CE(logits_per_{other_k}_sketch)
    row_max = jnp.max(L, axis=-1, keepdims=True)                          # (B, 1)
    lse_row = jnp.log(jnp.sum(jnp.exp(L - row_max), axis=-1, keepdims=True)) + row_max

    # Column-wise logsumexp: CE(logits_per_sketch_{other_k}); col_max is reused
    # by the accuracy computation below.
    col_max = jnp.max(L, axis=0, keepdims=True)                           # (1, B)
    lse_col = jnp.log(jnp.sum(jnp.exp(L - col_max), axis=0, keepdims=True)) + col_max

    # Diagonal of L, extracted from L itself so it is bit-consistent with
    # col_max (important for the `diag >= col_max` accuracy shortcut with bf16
    # MXU operands).  One masked reduce over (B, B).
    eye = (jax.lax.broadcasted_iota(jnp.int32, (b, b), 0) ==
           jax.lax.broadcasted_iota(jnp.int32, (b, b), 1))
    diag_col = jnp.sum(jnp.where(eye, L, 0.0), axis=0, keepdims=True)     # (1, B)
    mean_diag = jnp.mean(diag_col)

    # labels == arange(B): CE target term is the diagonal; its mean is shared
    # by both directions.
    ce_other_to_sketch = jnp.mean(lse_row) - mean_diag
    ce_sketch_to_other = jnp.mean(lse_col) - mean_diag
    loss_k = 0.5 * (ce_other_to_sketch + ce_sketch_to_other)

    # Accuracy of argmax(logits_per_sketch_{other_k}) == label: column q of L is
    # predicted correctly iff its diagonal element attains the column max.
    correct = jnp.sum((diag_col >= col_max).astype(jnp.float32))
    acc_k = 100.0 * correct / jnp.float32(b)

    # Pack [loss_k, acc_k] into a lane-dense (8, 128) tile (full unmasked store).
    sub = jax.lax.broadcasted_iota(jnp.int32, (8, 128), 0)
    lane = jax.lax.broadcasted_iota(jnp.int32, (8, 128), 1)
    tile = jnp.where((sub == 0) & (lane == 0), loss_k,
                     jnp.where((sub == 0) & (lane == 1), acc_k, 0.0))
    out_ref[0] = tile.astype(jnp.float32)


def ulip_with_image_loss(pc_embed, text_embed, image_embed, sketch_embed,
                         logit_scale, *, use_bf16_matmul=True):
    """Returns a dict matching the PyTorch module output (single device)."""
    b, d = pc_embed.shape
    assert text_embed.shape == (b, d)
    assert image_embed.shape == (b, d)
    assert sketch_embed.shape == (b, d)

    scale = jnp.asarray(logit_scale, jnp.float32).reshape((1,))

    # VMEM budget for this kernel (embeddings resident + a handful of (B, B)
    # temporaries + output tile), clamped to [32 MiB, 64 MiB] so it is legal on
    # v5e/v6e/v7x alike.
    emb_bytes = b * d * 4
    blk_bytes = b * b * 4
    vmem_needed = 8 * emb_bytes + 10 * blk_bytes + 4 * (8 * 128 * 4) + (2 << 20)
    vmem_limit_bytes = int(min(64 << 20, max(32 << 20, 2 * vmem_needed)))

    cost = pl.CostEstimate(
        flops=int(3 * 2 * b * b * d + 4 * 3 * b * d),
        transcendentals=int(3 * 2 * b * b + 8 * b),
        bytes_accessed=int(4 * b * d * 4 + 3 * 8 * 128 * 4 + 4),
    )

    emb_spec = pl.BlockSpec((b, d), lambda k: (0, 0))   # full array, kept resident

    out = pl.pallas_call(
        functools.partial(ulip_block_kernel, use_bf16_matmul=use_bf16_matmul),
        out_shape=jax.ShapeDtypeStruct((3, 8, 128), jnp.float32),
        grid=(3,),
        in_specs=[
            pl.BlockSpec(memory_space=pltpu.MemorySpace.SMEM),   # logit_scale
            emb_spec,                                            # sketch
            emb_spec,                                            # image
            emb_spec,                                            # pc
            emb_spec,                                            # text
        ],
        out_specs=pl.BlockSpec((1, 8, 128), lambda k: (k, 0, 0)),
        compiler_params=pltpu.CompilerParams(
            dimension_semantics=("parallel",),
            vmem_limit_bytes=vmem_limit_bytes),
        cost_estimate=cost,
    )(scale, sketch_embed, image_embed, pc_embed, text_embed)

    loss = out[0, 0, 0] + out[1, 0, 0] + out[2, 0, 0]
    return {
        "loss": loss,
        "ulip_loss": loss,
        "sketch_image_acc": out[0, 0, 1],
        "sketch_text_acc": out[2, 0, 1],
        "sketch_pc_acc": out[1, 0, 1],
    }


def _reference(pc, text, img, sk, scale, mm_dtype=jnp.float32):
    """Pure-JAX reference mirroring the PyTorch forward (world_size == 1).

    mm_dtype=bfloat16 mimics the kernel's bf16-operand / f32-accumulate matmul
    (including folding the scale into the sketch before the cast), so the bf16
    kernel path can be checked tightly.
    """
    def norm(x):
        return x / jnp.maximum(jnp.linalg.norm(x, axis=-1, keepdims=True), 1e-12)

    pc, text, img, sk = norm(pc), norm(text), norm(img), norm(sk)
    b = sk.shape[0]
    labels = jnp.arange(b)
    sk_s = (sk * scale).astype(mm_dtype)

    def pair(other):
        l_os = jnp.dot(other.astype(mm_dtype), sk_s.T,
                       preferred_element_type=jnp.float32,
                       precision=jax.lax.Precision.HIGHEST)    # logits_per_other_sketch
        l_so = l_os.T                                          # logits_per_sketch_other

        def ce(l):
            return jnp.mean(jax.nn.logsumexp(l, axis=-1) - l[labels, labels])

        loss_pair = 0.5 * (ce(l_so) + ce(l_os))
        acc = 100.0 * jnp.sum(jnp.argmax(l_so, axis=-1) == labels) / b
        return loss_pair, acc

    li, ai = pair(img)
    lp, ap = pair(pc)
    lt, at = pair(text)
    return li + lp + lt, ai, at, ap


if __name__ == "__main__":
    B, D = 8, 32    # demo shape; production should use D as a multiple of 128
    key = jax.random.PRNGKey(0)
    k1, k2, k3, k4 = jax.random.split(key, 4)
    pc_embed = jax.random.normal(k1, (B, D), jnp.float32)
    text_embed = jax.random.normal(k2, (B, D), jnp.float32)
    image_embed = jax.random.normal(k3, (B, D), jnp.float32)
    sketch_embed = jax.random.normal(k4, (B, D), jnp.float32)
    logit_scale = jnp.float32(1.0 / 0.07)   # typical CLIP-style learned scale

    # --- f32 MXU path vs. f32 reference (tight) ------------------------------
    out_f32 = ulip_with_image_loss(pc_embed, text_embed, image_embed,
                                   sketch_embed, logit_scale,
                                   use_bf16_matmul=False)
    out_f32 = jax.tree_util.tree_map(jax.block_until_ready, out_f32)
    rl, rai, rat, rap = _reference(pc_embed, text_embed, image_embed,
                                   sketch_embed, logit_scale)
    assert jnp.allclose(out_f32["loss"], rl, rtol=2e-3, atol=2e-3), (out_f32["loss"], rl)
    assert jnp.allclose(out_f32["ulip_loss"], out_f32["loss"])
    assert jnp.allclose(out_f32["sketch_image_acc"], rai, atol=1e-3), (out_f32["sketch_image_acc"], rai)
    assert jnp.allclose(out_f32["sketch_text_acc"], rat, atol=1e-3), (out_f32["sketch_text_acc"], rat)
    assert jnp.allclose(out_f32["sketch_pc_acc"], rap, atol=1e-3), (out_f32["sketch_pc_acc"], rap)

    # --- default bf16 MXU path vs. bf16-mimicking reference (tight) ----------
    out = ulip_with_image_loss(pc_embed, text_embed, image_embed,
                               sketch_embed, logit_scale)
    out = jax.tree_util.tree_map(jax.block_until_ready, out)
    bl, bai, bat, bap = _reference(pc_embed, text_embed, image_embed,
                                   sketch_embed, logit_scale,
                                   mm_dtype=jnp.bfloat16)
    assert jnp.allclose(out["loss"], bl, rtol=2e-3, atol=2e-3), (out["loss"], bl)
    assert jnp.allclose(out["ulip_loss"], out["loss"])
    assert jnp.allclose(out["sketch_image_acc"], bai, atol=1e-3), (out["sketch_image_acc"], bai)
    assert jnp.allclose(out["sketch_text_acc"], bat, atol=1e-3), (out["sketch_text_acc"], bat)
    assert jnp.allclose(out["sketch_pc_acc"], bap, atol=1e-3), (out["sketch_pc_acc"], bap)

    # --- bf16 path should still track the exact f32 reference loosely --------
    assert jnp.allclose(out["loss"], rl, rtol=5e-2, atol=5e-2), (out["loss"], rl)

    print("KERNEL_OK")
</pallas_src>

<mosaic_0001>
module attributes {stable_mosaic.version = 11 : i64} {
  func.func @ulip_block_kernel(%arg0: i32, %arg1: memref<1xf32, #tpu.memory_space<smem>>, %arg2: memref<8x32xf32, #tpu.memory_space<vmem>>, %arg3: memref<8x32xf32, #tpu.memory_space<vmem>>, %arg4: memref<8x32xf32, #tpu.memory_space<vmem>>, %arg5: memref<8x32xf32, #tpu.memory_space<vmem>>, %arg6: memref<1x8x128xf32, #tpu.memory_space<vmem>>) attributes {dimension_semantics = [#tpu.dimension_semantics<parallel>], iteration_bounds = array<i64: 3>, scalar_prefetch = 0 : i64, scratch_operands = 0 : i64, tpu.core_type = #tpu.core_type<tc>, window_params = [{transform_indices = @transform_0, window_bounds = array<i64: 1>}, {pipeline_mode = #tpu.pipeline_mode<synchronous>, transform_indices = @transform_1, window_bounds = array<i64: 8, 32>}, {pipeline_mode = #tpu.pipeline_mode<synchronous>, transform_indices = @transform_2, window_bounds = array<i64: 8, 32>}, {pipeline_mode = #tpu.pipeline_mode<synchronous>, transform_indices = @transform_3, window_bounds = array<i64: 8, 32>}, {pipeline_mode = #tpu.pipeline_mode<synchronous>, transform_indices = @transform_4, window_bounds = array<i64: 8, 32>}, {transform_indices = @transform_5, window_bounds = array<i64: 1, 8, 128>}]} {
    %c0 = arith.constant 0 : index
    %0 = memref.load %arg1[%c0] : memref<1xf32, #tpu.memory_space<smem>>
    %c0_i32 = arith.constant 0 : i32
    %1 = arith.cmpi eq, %arg0, %c0_i32 : i32
    %c0_0 = arith.constant 0 : index
    %c0_1 = arith.constant 0 : index
    %2 = vector.load %arg3[%c0_0, %c0_1] : memref<8x32xf32, #tpu.memory_space<vmem>>, vector<8x32xf32>
    %c1_i32 = arith.constant 1 : i32
    %3 = arith.cmpi eq, %arg0, %c1_i32 : i32
    %c0_2 = arith.constant 0 : index
    %c0_3 = arith.constant 0 : index
    %4 = vector.load %arg4[%c0_2, %c0_3] : memref<8x32xf32, #tpu.memory_space<vmem>>, vector<8x32xf32>
    %c0_4 = arith.constant 0 : index
    %c0_5 = arith.constant 0 : index
    %5 = vector.load %arg5[%c0_4, %c0_5] : memref<8x32xf32, #tpu.memory_space<vmem>>, vector<8x32xf32>
    %6 = arith.select %3, %4, %5 : vector<8x32xf32>
    %7 = arith.select %1, %2, %6 : vector<8x32xf32>
    %c0_6 = arith.constant 0 : index
    %c0_7 = arith.constant 0 : index
    %8 = vector.load %arg2[%c0_6, %c0_7] : memref<8x32xf32, #tpu.memory_space<vmem>>, vector<8x32xf32>
    %9 = arith.mulf %8, %8 : vector<8x32xf32>
    %cst = arith.constant dense<0.000000e+00> : vector<8xf32>
    %10 = vector.multi_reduction <add>, %9, %cst [1] : vector<8x32xf32> to vector<8xf32>
    %11 = vector.shape_cast %10 : vector<8xf32> to vector<8x1xf32>
    %cst_8 = arith.constant 1.000000e-24 : f32
    %12 = vector.broadcast %cst_8 : f32 to vector<8x1xf32>
    %13 = arith.maximumf %11, %12 : vector<8x1xf32>
    %14 = math.rsqrt %13 : vector<8x1xf32>
    %15 = vector.broadcast %14 : vector<8x1xf32> to vector<8x32xf32>
    %16 = arith.mulf %8, %15 : vector<8x32xf32>
    %17 = vector.broadcast %0 : f32 to vector<8x32xf32>
    %18 = arith.mulf %16, %17 : vector<8x32xf32>
    %19 = arith.mulf %7, %7 : vector<8x32xf32>
    %cst_9 = arith.constant dense<0.000000e+00> : vector<8xf32>
    %20 = vector.multi_reduction <add>, %19, %cst_9 [1] : vector<8x32xf32> to vector<8xf32>
    %21 = vector.shape_cast %20 : vector<8xf32> to vector<8x1xf32>
    %cst_10 = arith.constant 1.000000e-24 : f32
    %22 = vector.broadcast %cst_10 : f32 to vector<8x1xf32>
    %23 = arith.maximumf %21, %22 : vector<8x1xf32>
    %24 = math.rsqrt %23 : vector<8x1xf32>
    %25 = vector.broadcast %24 : vector<8x1xf32> to vector<8x32xf32>
    %26 = arith.mulf %7, %25 : vector<8x32xf32>
    %27 = tpu.transpose %18, [1, 0] : vector<8x32xf32> -> vector<32x8xf32>
    %cst_11 = arith.constant dense<0.000000e+00> : vector<8x8xf32>
    %28 = tpu.matmul %26, %27, %cst_11 {dimension_numbers = #tpu.dot_dimension_numbers<[1], [0], [0], [1], [0, 0, 1, 1], [], []>} : vector<8x32xf32>, vector<32x8xf32>, vector<8x8xf32> -> vector<8x8xf32>
    %cst_12 = arith.constant dense<0xFF800000> : vector<8xf32>
    %29 = vector.multi_reduction <maximumf>, %28, %cst_12 [1] : vector<8x8xf32> to vector<8xf32>
    %30 = vector.shape_cast %29 : vector<8xf32> to vector<8x1xf32>
    %31 = vector.broadcast %30 : vector<8x1xf32> to vector<8x8xf32>
    %32 = arith.subf %28, %31 : vector<8x8xf32>
    %33 = math.exp %32 : vector<8x8xf32>
    %cst_13 = arith.constant dense<0.000000e+00> : vector<8xf32>
    %34 = vector.multi_reduction <add>, %33, %cst_13 [1] : vector<8x8xf32> to vector<8xf32>
    %35 = vector.shape_cast %34 : vector<8xf32> to vector<8x1xf32>
    %36 = math.log %35 : vector<8x1xf32>
    %37 = arith.addf %36, %30 : vector<8x1xf32>
    %cst_14 = arith.constant dense<0xFF800000> : vector<8xf32>
    %38 = vector.multi_reduction <maximumf>, %28, %cst_14 [0] : vector<8x8xf32> to vector<8xf32>
    %39 = vector.shape_cast %38 : vector<8xf32> to vector<1x8xf32>
    %40 = vector.broadcast %39 : vector<1x8xf32> to vector<8x8xf32>
    %41 = arith.subf %28, %40 : vector<8x8xf32>
    %42 = math.exp %41 : vector<8x8xf32>
    %cst_15 = arith.constant dense<0.000000e+00> : vector<8xf32>
    %43 = vector.multi_reduction <add>, %42, %cst_15 [0] : vector<8x8xf32> to vector<8xf32>
    %44 = vector.shape_cast %43 : vector<8xf32> to vector<1x8xf32>
    %45 = math.log %44 : vector<1x8xf32>
    %46 = arith.addf %45, %39 : vector<1x8xf32>
    %47 = tpu.iota {dimensions = array<i32: 0>} : vector<8x8xi32>
    %48 = tpu.iota {dimensions = array<i32: 1>} : vector<8x8xi32>
    %49 = arith.cmpi eq, %47, %48 : vector<8x8xi32>
    %cst_16 = arith.constant 0.000000e+00 : f32
    %50 = vector.broadcast %cst_16 : f32 to vector<8x8xf32>
    %51 = arith.select %49, %28, %50 : vector<8x8xi1>, vector<8x8xf32>
    %cst_17 = arith.constant dense<0.000000e+00> : vector<8xf32>
    %52 = vector.multi_reduction <add>, %51, %cst_17 [0] : vector<8x8xf32> to vector<8xf32>
    %53 = vector.shape_cast %52 : vector<8xf32> to vector<1x8xf32>
    %54 = vector.shape_cast %53 : vector<1x8xf32> to vector<1x1x8xf32>
    %cst_18 = arith.constant dense<0.000000e+00> : vector<1xf32>
    %55 = vector.multi_reduction <add>, %54, %cst_18 [1, 2] : vector<1x1x8xf32> to vector<1xf32>
    %56 = vector.shape_cast %55 : vector<1xf32> to vector<1x1x1xf32>
    %57 = vector.extract %56[0, 0, 0] : f32 from vector<1x1x1xf32>
    %cst_19 = arith.constant 8.000000e+00 : f32
    %58 = arith.divf %57, %cst_19 : f32
    %59 = vector.shape_cast %37 : vector<8x1xf32> to vector<1x8x1xf32>
    %cst_20 = arith.constant dense<0.000000e+00> : vector<1xf32>
    %60 = vector.multi_reduction <add>, %59, %cst_20 [1, 2] : vector<1x8x1xf32> to vector<1xf32>
    %61 = vector.shape_cast %60 : vector<1xf32> to vector<1x1x1xf32>
    %62 = vector.extract %61[0, 0, 0] : f32 from vector<1x1x1xf32>
    %cst_21 = arith.constant 8.000000e+00 : f32
    %63 = arith.divf %62, %cst_21 : f32
    %64 = arith.subf %63, %58 : f32
    %65 = vector.shape_cast %46 : vector<1x8xf32> to vector<1x1x8xf32>
    %cst_22 = arith.constant dense<0.000000e+00> : vector<1xf32>
    %66 = vector.multi_reduction <add>, %65, %cst_22 [1, 2] : vector<1x1x8xf32> to vector<1xf32>
    %67 = vector.shape_cast %66 : vector<1xf32> to vector<1x1x1xf32>
    %68 = vector.extract %67[0, 0, 0] : f32 from vector<1x1x1xf32>
    %cst_23 = arith.constant 8.000000e+00 : f32
    %69 = arith.divf %68, %cst_23 : f32
    %70 = arith.subf %69, %58 : f32
    %71 = arith.addf %64, %70 : f32
    %cst_24 = arith.constant 5.000000e-01 : f32
    %72 = arith.mulf %cst_24, %71 : f32
    %73 = arith.cmpf oge, %53, %39 : vector<1x8xf32>
    %74 = arith.extui %73 : vector<1x8xi1> to vector<1x8xi32>
    %75 = arith.sitofp %74 : vector<1x8xi32> to vector<1x8xf32>
    %76 = vector.shape_cast %75 : vector<1x8xf32> to vector<1x1x8xf32>
    %cst_25 = arith.constant dense<0.000000e+00> : vector<1xf32>
    %77 = vector.multi_reduction <add>, %76, %cst_25 [1, 2] : vector<1x1x8xf32> to vector<1xf32>
    %78 = vector.shape_cast %77 : vector<1xf32> to vector<1x1x1xf32>
    %79 = vector.extract %78[0, 0, 0] : f32 from vector<1x1x1xf32>
    %cst_26 = arith.constant 1.000000e+02 : f32
    %80 = arith.mulf %cst_26, %79 : f32
    %cst_27 = arith.constant 8.000000e+00 : f32
    %81 = arith.divf %80, %cst_27 : f32
    %82 = tpu.iota {dimensions = array<i32: 0>} : vector<8x128xi32>
    %83 = tpu.iota {dimensions = array<i32: 1>} : vector<8x128xi32>
    %c0_i32_28 = arith.constant 0 : i32
    %84 = vector.broadcast %c0_i32_28 : i32 to vector<8x128xi32>
    %85 = arith.cmpi eq, %82, %84 : vector<8x128xi32>
    %c0_i32_29 = arith.constant 0 : i32
    %86 = vector.broadcast %c0_i32_29 : i32 to vector<8x128xi32>
    %87 = arith.cmpi eq, %83, %86 : vector<8x128xi32>
    %88 = arith.andi %85, %87 : vector<8x128xi1>
    %c0_i32_30 = arith.constant 0 : i32
    %89 = vector.broadcast %c0_i32_30 : i32 to vector<8x128xi32>
    %90 = arith.cmpi eq, %82, %89 : vector<8x128xi32>
    %c1_i32_31 = arith.constant 1 : i32
    %91 = vector.broadcast %c1_i32_31 : i32 to vector<8x128xi32>
    %92 = arith.cmpi eq, %83, %91 : vector<8x128xi32>
    %93 = arith.andi %90, %92 : vector<8x128xi1>
    %cst_32 = arith.constant 0.000000e+00 : f32
    %94 = vector.broadcast %81 : f32 to vector<8x128xf32>
    %95 = vector.broadcast %cst_32 : f32 to vector<8x128xf32>
    %96 = arith.select %93, %94, %95 : vector<8x128xi1>, vector<8x128xf32>
    %97 = vector.broadcast %72 : f32 to vector<8x128xf32>
    %98 = arith.select %88, %97, %96 : vector<8x128xi1>, vector<8x128xf32>
    %c0_33 = arith.constant 0 : index
    %c0_34 = arith.constant 0 : index
    %c0_35 = arith.constant 0 : index
    %99 = vector.load %arg6[%c0_33, %c0_34, %c0_35] : memref<1x8x128xf32, #tpu.memory_space<vmem>>, vector<1x8x128xf32>
    %100 = vector.shape_cast %99 : vector<1x8x128xf32> to vector<8x128xf32>
    %101 = vector.shape_cast %98 : vector<8x128xf32> to vector<1x8x128xf32>
    tpu.vector_store %arg6[%c0_33, %c0_34, %c0_35], %101 {strides = array<i32>} : memref<1x8x128xf32, #tpu.memory_space<vmem>>, vector<1x8x128xf32>,
    return
  }
  func.func @transform_0(%arg0: i32) -> i32 {
    %c0_i32 = arith.constant 0 : i32
    %c0_i32_0 = arith.constant 0 : i32
    return %c0_i32 : i32
  }
  func.func @transform_1(%arg0: i32) -> (i32, i32) {
    %c0_i32 = arith.constant 0 : i32
    %c0_i32_0 = arith.constant 0 : i32
    %c0_i32_1 = arith.constant 0 : i32
    return %c0_i32, %c0_i32_0 : i32, i32
  }
  func.func @transform_2(%arg0: i32) -> (i32, i32) {
    %c0_i32 = arith.constant 0 : i32
    %c0_i32_0 = arith.constant 0 : i32
    %c0_i32_1 = arith.constant 0 : i32
    return %c0_i32, %c0_i32_0 : i32, i32
  }
  func.func @transform_3(%arg0: i32) -> (i32, i32) {
    %c0_i32 = arith.constant 0 : i32
    %c0_i32_0 = arith.constant 0 : i32
    %c0_i32_1 = arith.constant 0 : i32
    return %c0_i32, %c0_i32_0 : i32, i32
  }
  func.func @transform_4(%arg0: i32) -> (i32, i32) {
    %c0_i32 = arith.constant 0 : i32
    %c0_i32_0 = arith.constant 0 : i32
    %c0_i32_1 = arith.constant 0 : i32
    return %c0_i32, %c0_i32_0 : i32, i32
  }
  func.func @transform_5(%arg0: i32) -> (i32, i32, i32) {
    %c0_i32 = arith.constant 0 : i32
    %c0_i32_0 = arith.constant 0 : i32
    %c0_i32_1 = arith.constant 0 : i32
    return %arg0, %c0_i32, %c0_i32_0 : i32, i32, i32
  }
}

</mosaic_0001>

<llo_original>
// kernel: tpu_custom_call.1
$region0: #{tpu_custom_call.1}
  #allocation0 [shape = 'u32[]', space=smem, size = 0x4, offset = 0x4, fixed_abs, tag = 'smem constant byte address 0x4 - core index']
  #allocation1 [shape = 'u32[144,128]{1,0:T(1,128)}', space=vmem, size = 0x12000, scoped, tag = 'internal scratch']
  #allocation2 [shape = 'f32[1]{0:T(128)S(6)}', space=smem, size = 0x200, scoped, tag = 'scoped memory for tpu_custom_call.1']
  %s0 = inlined_call_operand.<no memory space> [shape: f32[1], index: 0, kind: input, shape index: {}]
  %s1 = inlined_call_operand.hbm [shape: f32[8,32], index: 1, kind: input, shape index: {}]
  %s2 = inlined_call_operand.hbm [shape: f32[8,32], index: 2, kind: input, shape index: {}]
  %s3 = inlined_call_operand.vmem [shape: f32[8,32], index: 3, kind: input, shape index: {}]
  %s4 = inlined_call_operand.hbm [shape: f32[8,32], index: 4, kind: input, shape index: {}]
  %s5 = inlined_call_operand.hbm [shape: f32[3,8,128], index: 5, kind: output, shape index: {}]
  %s6 = sld [smem:[#allocation0]]
  $region65: #{tpu_custom_call.1} parent=0
    _
  %s8 = ssub.s32 1, %s6
  %s9 = scalar_select 0, %s8, %s6
  %10 = sst [smem:[#allocation2]] %s0
  $region1: #{tpu_custom_call.1} parent=0
    #allocation3 [shape = 'u8[4096]{0}', space=vmem, size = 0x1000, scoped, tag = 'input window, operand 1, single buffered']
    #allocation4 [shape = 's32[2]{0}', space=sflag, size = 0x8, scoped, tag = 'scoped memory for tpu_custom_call.1']
    #allocation5 [shape = 's32[2]{0}', space=sflag, size = 0x8, scoped, tag = 'scoped memory for tpu_custom_call.1']
    #allocation6 [shape = 'u8[4096]{0}', space=vmem, size = 0x1000, scoped, tag = 'input window, operand 2, single buffered']
    #allocation7 [shape = 's32[1]{0}', space=sflag, size = 0x4, scoped, tag = 'scoped memory for tpu_custom_call.1']
    #allocation8 [shape = 'u8[4096]{0}', space=vmem, size = 0x1000, scoped, tag = 'input window, operand 4, single buffered']
    #allocation9 [shape = 'u8[8192]{0}', space=vmem, size = 0x2000, scoped, tag = 'output window, operand 0']
    %11 = vsyncpa [#allocation4], 0
    %12 = vsyncpa [#allocation7], 0
    %13 = vsyncpa [#allocation5], 0
    %s14 = scalar_lea.sflag [#allocation5], 1
    %15 = vsyncpa %s14, 0
    loop: start=0, step=1, limit=5
    $region2: #{tpu_custom_call.1} parent=1 // loop_pre_header
      _
    $region3: #{tpu_custom_call.1} parent=1 // loop_header
      %s17 = sphi 0, %s21
      %p18 = scmp.ge.s32.totalorder %s17, 5
      %s25 = sphi 0, %s25
      %s27 = sphi 0, %s25
      %s28 = sphi 0, %s27
      %s42 = sphi 0, %s28
      %s46 = sphi 0, %s46
      %s48 = sphi 0, %s46
      %s49 = sphi 0, %s48
      %s63 = sphi 0, %s49
      %s67 = sphi 0, %s67
      %s69 = sphi 0, %s67
      %s70 = sphi 0, %s69
      %s84 = sphi 0, %s70
      %s88 = sphi 0, %s88
      %s90 = sphi 0, %s88
      %s91 = sphi 0, %s90
      %s105 = sphi 0, %s91
      %s109 = sphi 0, %s109
      %s111 = sphi 0, %s109
      %s112 = sphi 0, %s111
      %s126 = sphi 0, %s112
      %s132 = sphi 0, %s134
      %s135 = sphi 0, %s132
      %s136 = sphi 0, %s135
      %s152 = sphi 0, %s136
    $region4: #{tpu_custom_call.1} parent=1 // loop_header_branch
      %20 = sbr.rel (%p18) target = $region8
    $region5: #{tpu_custom_call.1} parent=1 // loop_body
      %s22 = ssub.s32 %s17, 1
      %s23 = ssub.s32 %s17, 2
      %s24 = sadd.s32 %s17, 1
      %s26 = sadd.s32 %s25, 1
      %p29 = scmp.eq.s32.totalorder %s17, 2
      %p30 = scmp.ne.s32.totalorder %s25, %s27
      %p31 = scmp.eq.s32.totalorder %s17, 0
      %p32 = por %p30, %p31
      %p33 = scmp.ne.s32.totalorder %s25, %s27
      %p34 = scmp.eq.s32.totalorder %s22, 2
      %p35 = por %p33, %p34
      %p36 = scmp.ne.s32.totalorder %s27, %s28
      %p37 = scmp.eq.s32.totalorder %s22, 0
      %p38 = por %p36, %p37
      %p39 = scmp.ne.s32.totalorder %s27, %s28
      %p40 = scmp.eq.s32.totalorder %s23, 2
      %p41 = por %p39, %p40
      %p43 = scmp.ne.s32.totalorder %s28, %s42
      %p44 = scmp.eq.s32.totalorder %s23, 0
      %p45 = por %p43, %p44
      %s47 = sadd.s32 %s46, 1
      %p50 = scmp.eq.s32.totalorder %s17, 2
      %p51 = scmp.ne.s32.totalorder %s46, %s48
      %p52 = scmp.eq.s32.totalorder %s17, 0
      %p53 = por %p51, %p52
      %p54 = scmp.ne.s32.totalorder %s46, %s48
      %p55 = scmp.eq.s32.totalorder %s22, 2
      %p56 = por %p54, %p55
      %p57 = scmp.ne.s32.totalorder %s48, %s49
      %p58 = scmp.eq.s32.totalorder %s22, 0
      %p59 = por %p57, %p58
      %p60 = scmp.ne.s32.totalorder %s48, %s49
      %p61 = scmp.eq.s32.totalorder %s23, 2
      %p62 = por %p60, %p61
      %p64 = scmp.ne.s32.totalorder %s49, %s63
      %p65 = scmp.eq.s32.totalorder %s23, 0
      %p66 = por %p64, %p65
      %s68 = sadd.s32 %s67, 1
      %p71 = scmp.eq.s32.totalorder %s17, 2
      %p72 = scmp.ne.s32.totalorder %s67, %s69
      %p73 = scmp.eq.s32.totalorder %s17, 0
      %p74 = por %p72, %p73
      %p75 = scmp.ne.s32.totalorder %s67, %s69
      %p76 = scmp.eq.s32.totalorder %s22, 2
      %p77 = por %p75, %p76
      %p78 = scmp.ne.s32.totalorder %s69, %s70
      %p79 = scmp.eq.s32.totalorder %s22, 0
      %p80 = por %p78, %p79
      %p81 = scmp.ne.s32.totalorder %s69, %s70
      %p82 = scmp.eq.s32.totalorder %s23, 2
      %p83 = por %p81, %p82
      %p85 = scmp.ne.s32.totalorder %s70, %s84
      %p86 = scmp.eq.s32.totalorder %s23, 0
      %p87 = por %p85, %p86
      %s89 = sadd.s32 %s88, 1
      %p92 = scmp.eq.s32.totalorder %s17, 2
      %p93 = scmp.ne.s32.totalorder %s88, %s90
      %p94 = scmp.eq.s32.totalorder %s17, 0
      %p95 = por %p93, %p94
      %p96 = scmp.ne.s32.totalorder %s88, %s90
      %p97 = scmp.eq.s32.totalorder %s22, 2
      %p98 = por %p96, %p97
      %p99 = scmp.ne.s32.totalorder %s90, %s91
      %p100 = scmp.eq.s32.totalorder %s22, 0
      %p101 = por %p99, %p100
      %p102 = scmp.ne.s32.totalorder %s90, %s91
      %p103 = scmp.eq.s32.totalorder %s23, 2
      %p104 = por %p102, %p103
      %p106 = scmp.ne.s32.totalorder %s91, %s105
      %p107 = scmp.eq.s32.totalorder %s23, 0
      %p108 = por %p106, %p107
      %s110 = sadd.s32 %s109, 1
      %p113 = scmp.eq.s32.totalorder %s17, 2
      %p114 = scmp.ne.s32.totalorder %s109, %s111
      %p115 = scmp.eq.s32.totalorder %s17, 0
      %p116 = por %p114, %p115
      %p117 = scmp.ne.s32.totalorder %s109, %s111
      %p118 = scmp.eq.s32.totalorder %s22, 2
      %p119 = por %p117, %p118
      %p120 = scmp.ne.s32.totalorder %s111, %s112
      %p121 = scmp.eq.s32.totalorder %s22, 0
      %p122 = por %p120, %p121
      %p123 = scmp.ne.s32.totalorder %s111, %s112
      %p124 = scmp.eq.s32.totalorder %s23, 2
      %p125 = por %p123, %p124
      %p127 = scmp.ne.s32.totalorder %s112, %s126
      %p128 = scmp.eq.s32.totalorder %s23, 0
      %p129 = por %p127, %p128
      %s130 = ssub.s32 %s17, %s24
      %p131 = scmp.eq.s32.totalorder %s130, 0
      %s133 = sadd.s32 %s132, 1
      %s134 = scalar_select %p131, %s132, %s133
      %p137 = pneg %p131
      %p138 = scmp.eq.s32.totalorder %s17, 2
      %p139 = por %p137, %p138
      %p140 = scmp.ne.s32.totalorder %s132, %s135
      %p141 = scmp.eq.s32.totalorder %s17, 0
      %p142 = por %p140, %p141
      %p143 = scmp.ne.s32.totalorder %s132, %s135
      %p144 = scmp.eq.s32.totalorder %s22, 2
      %p145 = por %p143, %p144
      %p146 = scmp.ne.s32.totalorder %s135, %s136
      %p147 = scmp.eq.s32.totalorder %s22, 0
      %p148 = por %p146, %p147
      %p149 = scmp.ne.s32.totalorder %s135, %s136
      %p150 = scmp.eq.s32.totalorder %s23, 2
      %p151 = por %p149, %p150
      %p153 = scmp.ne.s32.totalorder %s136, %s152
      %p154 = scmp.eq.s32.totalorder %s23, 0
      %p155 = por %p153, %p154
      %p156 = scmp.le.s32.totalorder 1, %s17
      %p157 = scmp.lt.s32.totalorder %s17, 4
      %p158 = pnand %p156, %p157
      %p159 = pneg %p158
      // Predicated region
      $region9: #{tpu_custom_call.1} parent=5 // pred_check
        _
      $region10: #{tpu_custom_call.1} parent=5 // pred_check_branch
        %161 = sbr.rel (%p158) target = $region12
      $region11: #{tpu_custom_call.1} parent=5 // pred_region
        %s162 = ssub.s32 %s17, 1
        // Predicated region
        $region13: #{tpu_custom_call.1} parent=11 // pred_check
          %p163 = pneg %p38
        $region14: #{tpu_custom_call.1} parent=11 // pred_check_branch
          %165 = sbr.rel (%p163) target = $region16
        $region15: #{tpu_custom_call.1} parent=11 // pred_region
          _
        $region16: #{tpu_custom_call.1} parent=11 // pred_fallthru
          _
        // Predicated region
        $region17: #{tpu_custom_call.1} parent=11 // pred_check
          %p166 = pneg %p59
        $region18: #{tpu_custom_call.1} parent=11 // pred_check_branch
          %168 = sbr.rel (%p166) target = $region20
        $region19: #{tpu_custom_call.1} parent=11 // pred_region
          %s170 = ssub.s32 128, 128
          %171 = vsyncadd [#allocation4], %s170
          %s173 = sshll.u32 [#allocation3], 4
          %s174 = int_to_ptr.vmem [resolvable:$true] %s173
          %176 = dma.hbm_to_vmem [thread:$0]  %s1, 128, %s174, [#allocation4]
        $region20: #{tpu_custom_call.1} parent=11 // pred_fallthru
          _
        // Predicated region
        $region21: #{tpu_custom_call.1} parent=11 // pred_check
          %p177 = pneg %p80
        $region22: #{tpu_custom_call.1} parent=11 // pred_check_branch
          %179 = sbr.rel (%p177) target = $region24
        $region23: #{tpu_custom_call.1} parent=11 // pred_region
          %s181 = ssub.s32 128, 128
          %182 = vsyncadd [#allocation7], %s181
          %s184 = sshll.u32 [#allocation6], 4
          %s185 = int_to_ptr.vmem [resolvable:$true] %s184
          %187 = dma.hbm_to_vmem [thread:$0]  %s2, 128, %s185, [#allocation7]
        $region24: #{tpu_custom_call.1} parent=11 // pred_fallthru
          _
        // Predicated region
        $region25: #{tpu_custom_call.1} parent=11 // pred_check
          %p188 = pneg %p101
        $region26: #{tpu_custom_call.1} parent=11 // pred_check_branch
          %190 = sbr.rel (%p188) target = $region28
        $region27: #{tpu_custom_call.1} parent=11 // pred_region
          _
        $region28: #{tpu_custom_call.1} parent=11 // pred_fallthru
          _
        // Predicated region
        $region29: #{tpu_custom_call.1} parent=11 // pred_check
          %p191 = pneg %p122
        $region30: #{tpu_custom_call.1} parent=11 // pred_check_branch
          %193 = sbr.rel (%p191) target = $region32
        $region31: #{tpu_custom_call.1} parent=11 // pred_region
          %s195 = ssub.s32 128, 128
          %196 = vsyncadd [#allocation7], %s195
          %s198 = sshll.u32 [#allocation8], 4
          %s199 = int_to_ptr.vmem [resolvable:$true] %s198
          %201 = dma.hbm_to_vmem [thread:$0]  %s4, 128, %s199, [#allocation7]
        $region32: #{tpu_custom_call.1} parent=11 // pred_fallthru
          _
      $region12: #{tpu_custom_call.1} parent=5 // pred_fallthru
        _
      %p202 = scmp.lt.s32.totalorder %s17, 3
      // Predicated region
      $region33: #{tpu_custom_call.1} parent=5 // pred_check
        %p203 = pneg %p202
      $region34: #{tpu_custom_call.1} parent=5 // pred_check_branch
        %205 = sbr.rel (%p203) target = $region36
      $region35: #{tpu_custom_call.1} parent=5 // pred_region
        _
      $region36: #{tpu_custom_call.1} parent=5 // pred_fallthru
        _
      %p206 = scmp.le.s32.totalorder 1, %s17
      %p207 = scmp.lt.s32.totalorder %s17, 4
      %p208 = pnand %p206, %p207
      %p209 = pneg %p208
      // Predicated region
      $region37: #{tpu_custom_call.1} parent=5 // pred_check
        _
      $region38: #{tpu_custom_call.1} parent=5 // pred_check_branch
        %211 = sbr.rel (%p208) target = $region40
      $region39: #{tpu_custom_call.1} parent=5 // pred_region
        %s212 = ssub.s32 %s17, 1
        // Predicated region
        $region41: #{tpu_custom_call.1} parent=39 // pred_check
          %p213 = pneg %p59
        $region42: #{tpu_custom_call.1} parent=39 // pred_check_branch
          %215 = sbr.rel (%p213) target = $region44
        $region43: #{tpu_custom_call.1} parent=39 // pred_region
          %216 = dma.done [#allocation4], 128
        $region44: #{tpu_custom_call.1} parent=39 // pred_fallthru
          _
        // Predicated region
        $region45: #{tpu_custom_call.1} parent=39 // pred_check
          %p217 = pneg %p80
        $region46: #{tpu_custom_call.1} parent=39 // pred_check_branch
          %219 = sbr.rel (%p217) target = $region48
        $region47: #{tpu_custom_call.1} parent=39 // pred_region
          %220 = dma.done [#allocation7], 128
        $region48: #{tpu_custom_call.1} parent=39 // pred_fallthru
          _
        // Predicated region
        $region49: #{tpu_custom_call.1} parent=39 // pred_check
          %p221 = pneg %p122
        $region50: #{tpu_custom_call.1} parent=39 // pred_check_branch
          %223 = sbr.rel (%p221) target = $region52
        $region51: #{tpu_custom_call.1} parent=39 // pred_region
          %224 = dma.done [#allocation7], 128
        $region52: #{tpu_custom_call.1} parent=39 // pred_fallthru
          _
        %p225 = pneg %p38
        %p226 = pneg %p35
        %p227 = pneg %p59
        %p228 = pneg %p56
        %p229 = pneg %p80
        %p230 = pneg %p77
        %p231 = pneg %p101
        %p232 = pneg %p98
        %p233 = pneg %p122
        %p234 = pneg %p119
        %p235 = pneg %p148
        %p236 = pneg %p145
        %s237 = sand.u32 %s135, 1
        %s238 = scalar_lea.sflag [#allocation5], %s237
        %s239 = sand.u32 %s135, 1
        %s240 = smul.addr %s239, 8
        %s241 = scalar_lea.vmem [#allocation9], %s240
        %s242 = sld [smem:[#allocation2]]
        %p243 = scmp.eq.s32.totalorder %s22, 0
        %v244 = vld [vmem:[#allocation6] sm:$0xff]
        %p245 = scmp.eq.s32.totalorder %s22, 1
        %v246 = vld [vmem:[%s3] sm:$0xff]
        %v247 = vld [vmem:[#allocation8] sm:$0xff]
        %s248 = scalar_select %p245, 1, 0
        %v249 = vstv %s248
        %vm250 = vcmp.eq.s32.totalorder %v249, 1
        %v251 = vsel %vm250, %v246, %v247
        %s252 = scalar_select %p243, 1, 0
        %v253 = vstv %s252
        %vm254 = vcmp.eq.s32.totalorder %v253, 1
        %v255 = vsel %vm254, %v244, %v251
        %v256 = vld [vmem:[#allocation3] sm:$0xff]
        %v257 = vmul.f32 %v256, %v256
        %vm258 = vcmask 261120
        %v259 = vsel %vm258, %v257, 0.0
        %260 = vadd.xlane.f32.xlu0 %v259
        %v261 = vpop.xlane.xlu0 %260
        %v262 = vmax.f32 %v261, 1e-24
        %v263 = vrsqrt.pop %v262
        %v264 = vmul.f32 %v256, %v263
        %v265 = vstv %s242
        %v266 = vmul.f32 %v264, %v265
        %v267 = vmul.f32 %v255, %v255
        %v268 = vsel %vm258, %v267, 0.0
        %269 = vadd.xlane.f32.xlu0 %v268
        %v270 = vpop.xlane.xlu0 %269
        %v271 = vmax.f32 %v270, 1e-24
        %v272 = vrsqrt.pop %v271
        %v273 = vmul.f32 %v255, %v272
        %v275 = vsel %vm258, %v273, 0
        %v278 = vsel %vm258, %v266, 0
        %280 = vmatprep.subr.mxu0 0.0
        %281 = vmatpush1.xpose.msra.mxu0 %v278
        %282 = vmatprep.subr.mxu0 0.0
        %283 = vmatpush1.xpose.msra.mxu0 0.0
        %284 = vmatprep.subr.mxu0 0.0
        %285 = vmatpush1.xpose.msra.mxu0 0.0
        %286 = vmatprep.subr.mxu0 0.0
        %287 = vmatpush1.xpose.msra.mxu0 0.0
        %288 = vmatprep.subr.mxu0 0.0
        %289 = vmatpush1.xpose.msra.mxu0 0.0
        %290 = vmatprep.subr.mxu0 0.0
        %291 = vmatpush1.xpose.msra.mxu0 0.0
        %292 = vmatprep.subr.mxu0 0.0
        %293 = vmatpush1.xpose.msra.mxu0 0.0
        %294 = vmatprep.subr.mxu0 0.0
        %295 = vmatpush1.xpose.msra.mxu0 0.0
        %296 = vmatprep.subr.mxu0 0.0
        %297 = vmatpush1.xpose.msra.mxu0 0.0
        %298 = vmatprep.subr.mxu0 0.0
        %299 = vmatpush1.xpose.msra.mxu0 0.0
        %300 = vmatprep.subr.mxu0 0.0
        %301 = vmatpush1.xpose.msra.mxu0 0.0
        %302 = vmatprep.subr.mxu0 0.0
        %303 = vmatpush1.xpose.msra.mxu0 0.0
        %304 = vmatprep.subr.mxu0 0.0
        %305 = vmatpush1.xpose.msra.mxu0 0.0
        %306 = vmatprep.subr.mxu0 0.0
        %307 = vmatpush1.xpose.msra.mxu0 0.0
        %308 = vmatprep.subr.mxu0 0.0
        %309 = vmatpush1.xpose.msra.mxu0 0.0
        %310 = vmatprep.subr.mxu0 0.0
        %311 = vmatpush1.xpose.msra.mxu0 0.0
        %312 = vmatprep.subr.mxu0 0.0
        %313 = vmatpush1.xpose.msra.mxu0 0.0
        %314 = vmatprep.subr.mxu0 0.0
        %315 = vmatpush1.xpose.msra.mxu0 0.0
        %316 = vmatprep.subr.mxu0 0.0
        %317 = vmatpush1.xpose.msra.mxu0 0.0
        %318 = vmatprep.subr.mxu0 0.0
        %319 = vmatpush1.xpose.msra.mxu0 0.0
        %320 = vmatprep.subr.mxu0 0.0
        %321 = vmatpush1.xpose.msra.mxu0 0.0
        %322 = vmatprep.subr.mxu0 0.0
        %323 = vmatpush1.xpose.msra.mxu0 0.0
        %324 = vmatprep.subr.mxu0 0.0
        %325 = vmatpush1.xpose.msra.mxu0 0.0
        %326 = vmatprep.subr.mxu0 0.0
        %327 = vmatpush1.xpose.msra.mxu0 0.0
        %328 = vmatprep.subr.mxu0 0.0
        %329 = vmatpush1.xpose.msra.mxu0 0.0
        %330 = vmatprep.subr.mxu0 0.0
        %331 = vmatpush1.xpose.msra.mxu0 0.0
        %332 = vmatprep.subr.mxu0 0.0
        %333 = vmatpush1.xpose.msra.mxu0 0.0
        %334 = vmatprep.subr.mxu0 0.0
        %335 = vmatpush1.xpose.msra.mxu0 0.0
        %336 = vmatprep.subr.mxu0 0.0
        %337 = vmatpush1.xpose.msra.mxu0 0.0
        %338 = vmatprep.subr.mxu0 0.0
        %339 = vmatpush1.xpose.msra.mxu0 0.0
        %340 = vmatprep.subr.mxu0 0.0
        %341 = vmatpush1.xpose.msra.mxu0 0.0
        %342 = vmatprep.subr.mxu0 0.0
        %343 = vmatpush1.xpose.msra.mxu0 0.0
        %344 = vmatprep.mubr.f32.mxu0 0.0
        %345 = vmatmul.mubr.f32.gmra.mrb[0].mxu0 %v275
        %v346 = vpop.f32.mrb[0].mxu0
        %v347 = vadd.f32 0.0, %v346
        %v348 = vpop.f32.mrb[0].mxu0
        %349 = vdwg.mxu0
        %vm350 = vcmask 64512
        %v351 = vsel %vm350, %v347, -inf
        %352 = vmax.xlane.f32.xlu0 %v351
        %v353 = vpop.xlane.xlu0 %352
        %v354 = vsub.f32 %v347, %v353
        %v355 = vmul.f32 %v354, 1.442695
        %v356 = vpow.pop %v355
        %v357 = vsel %vm350, %v356, 0.0
        %358 = vadd.xlane.f32.xlu0 %v357
        %v359 = vpop.xlane.xlu0 %358
        %v360 = vlog2.pop %v359
        %v361 = vmul.f32 %v360, 0.6931472
        %v362 = vadd.f32 %v361, %v353
        %v363 = vrot.slane %v351, 4
        %v364 = vmax.f32 %v351, %v363
        %v365 = vrot.slane %v364, 2
        %v366 = vmax.f32 %v364, %v365
        %v367 = vrot.slane %v366, 1
        %v368 = vmax.f32 %v366, %v367
        %v369 = vsub.f32 %v347, %v368
        %v370 = vmul.f32 %v369, 1.442695
        %v371 = vpow.pop %v370
        %v372 = vsel %vm350, %v371, 0.0
        %v373 = vrot.slane %v372, 4
        %v374 = vadd.f32 %v372, %v373
        %v375 = vrot.slane %v374, 2
        %v376 = vadd.f32 %v374, %v375
        %v377 = vrot.slane %v376, 1
        %v378 = vadd.f32 %v376, %v377
        %v379 = vlog2.pop %v378
        %v380 = vmul.f32 %v379, 0.6931472
        %v381 = vadd.f32 %v380, %v368
        %v382 = vlaneseq
        %v383 = vshrl.u32 %v382, 7
        %v384 = vlaneseq
        %v385 = vand.u32 %v384, 127
        %vm386 = vcmp.eq.s32.totalorder %v383, %v385
        %v387 = vsel %vm386, %v347, 0.0
        %v388 = vsel %vm350, %v387, 0.0
        %v389 = vrot.slane %v388, 4
        %v390 = vadd.f32 %v388, %v389
        %v391 = vrot.slane %v390, 2
        %v392 = vadd.f32 %v390, %v391
        %v393 = vrot.slane %v392, 1
        %v394 = vadd.f32 %v392, %v393
        %vm395 = vcmask 57344
        %v396 = vsel %vm395, %v394, 0.0
        %397 = vadd.xlane.f32.xlu0 %v396
        %v398 = vpop.xlane.xlu0 %397
        %v399 = vrot.slane %v398, 4
        %v400 = vadd.f32 %v398, %v399
        %v401 = vrot.slane %v400, 2
        %v402 = vadd.f32 %v400, %v401
        %v403 = vrot.slane %v402, 1
        %v404 = vadd.f32 %v402, %v403
        %s405 = vtos %v404
        %v406 = vrcp.pop 8.0
        %s407 = vtos %v406
        %s408 = smul.f32 %s405, %s407
        %vm409 = vcmask 7168
        %v410 = vsel %vm409, %v362, 0.0
        %411 = vadd.xlane.f32.xlu0 %v410
        %v412 = vpop.xlane.xlu0 %411
        %v413 = vrot.slane %v412, 4
        %v414 = vadd.f32 %v412, %v413
        %v415 = vrot.slane %v414, 2
        %v416 = vadd.f32 %v414, %v415
        %v417 = vrot.slane %v416, 1
        %v418 = vadd.f32 %v416, %v417
        %s419 = vtos %v418
        %v420 = vrcp.pop 8.0
        %s421 = vtos %v420
        %s422 = smul.f32 %s419, %s421
        %s423 = ssub.f32 %s422, %s408
        %v424 = vsel %vm395, %v381, 0.0
        %425 = vadd.xlane.f32.xlu0 %v424
        %v426 = vpop.xlane.xlu0 %425
        %v427 = vrot.slane %v426, 4
        %v428 = vadd.f32 %v426, %v427
        %v429 = vrot.slane %v428, 2
        %v430 = vadd.f32 %v428, %v429
        %v431 = vrot.slane %v430, 1
        %v432 = vadd.f32 %v430, %v431
        %s433 = vtos %v432
        %v434 = vrcp.pop 8.0
        %s435 = vtos %v434
        %s436 = smul.f32 %s433, %s435
        %s437 = ssub.f32 %s436, %s408
        %s438 = sadd.f32 %s423, %s437
        %s439 = smul.f32 %s438, 0.5
        %vm440 = vcmp.ge.f32.partialorder %v394, %v368
        %v441 = vsel %vm440, 1, 0
        %v442 = vcvt.s32.f32 %v441
        %v443 = vsel %vm395, %v442, 0.0
        %444 = vadd.xlane.f32.xlu0 %v443
        %v445 = vpop.xlane.xlu0 %444
        %v446 = vrot.slane %v445, 4
        %v447 = vadd.f32 %v445, %v446
        %v448 = vrot.slane %v447, 2
        %v449 = vadd.f32 %v447, %v448
        %v450 = vrot.slane %v449, 1
        %v451 = vadd.f32 %v449, %v450
        %s452 = vtos %v451
        %s453 = smul.f32 %s452, 100.0
        %v454 = vrcp.pop 8.0
        %s455 = vtos %v454
        %s456 = smul.f32 %s453, %s455
        %vm457 = vcmp.eq.s32.totalorder %v383, 0
        %vm458 = vcmp.eq.s32.totalorder %v385, 0
        %vm459 = vmand %vm457, %vm458
        %vm460 = vcmp.eq.s32.totalorder %v385, 1
        %vm461 = vmand %vm457, %vm460
        %v462 = vstv %s456
        %v463 = vsel %vm461, %v462, 0.0
        %v464 = vstv %s439
        %v465 = vsel %vm459, %v464, %v463
        %466 = vst [vmem:[%s241] sm:$0xff] %v465
        %s467 = sand.u32 %s135, 1
        %s468 = scalar_lea.sflag [#allocation5], %s467
        %s469 = sand.u32 %s135, 1
        %s470 = smul.addr %s469, 8
        %s471 = scalar_lea.vmem [#allocation9], %s470
        // Predicated region
        $region53: #{tpu_custom_call.1} parent=39 // pred_check
          %p472 = pneg %p145
        $region54: #{tpu_custom_call.1} parent=39 // pred_check_branch
          %474 = sbr.rel (%p472) target = $region56
        $region55: #{tpu_custom_call.1} parent=39 // pred_region
          %s476 = ssub.s32 128, 128
          %477 = vsyncadd %s468, %s476
          %s478 = smul.addr %s22, 128
          %s479 = scalar_lea.hbm %s5, %s478
          %s481 = sshll.u32 %s471, 4
          %s482 = int_to_ptr.vmem [resolvable:$true] %s481
          %484 = dma.vmem_to_hbm [thread:$0]  %s482, 128, %s479, %s468
        $region56: #{tpu_custom_call.1} parent=39 // pred_fallthru
          _
      $region40: #{tpu_custom_call.1} parent=5 // pred_fallthru
        _
      %p485 = scmp.le.s32.totalorder 2, %s17
      // Predicated region
      $region57: #{tpu_custom_call.1} parent=5 // pred_check
        %p486 = pneg %p485
      $region58: #{tpu_custom_call.1} parent=5 // pred_check_branch
        %488 = sbr.rel (%p486) target = $region60
      $region59: #{tpu_custom_call.1} parent=5 // pred_region
        %s489 = ssub.s32 %s17, 2
        // Predicated region
        $region61: #{tpu_custom_call.1} parent=59 // pred_check
          %p490 = pneg %p151
        $region62: #{tpu_custom_call.1} parent=59 // pred_check_branch
          %492 = sbr.rel (%p490) target = $region64
        $region63: #{tpu_custom_call.1} parent=59 // pred_region
          %s493 = sand.u32 %s136, 1
          %s494 = scalar_lea.sflag [#allocation5], %s493
          %s495 = sand.u32 %s136, 1
          %s496 = smul.addr %s495, 8
          %s497 = scalar_lea.vmem [#allocation9], %s496
          %498 = dma.done %s494, 128
        $region64: #{tpu_custom_call.1} parent=59 // pred_fallthru
          _
      $region60: #{tpu_custom_call.1} parent=5 // pred_fallthru
        _
    $region6: #{tpu_custom_call.1} parent=1 // loop_footer
      %s21 = sadd.s32 1, %s17
    $region7: #{tpu_custom_call.1} parent=1 // loop_footer_branch
      %16 = sbr.rel target = $region3
    $region8: #{tpu_custom_call.1} parent=1 // loop_exit
      _
    %499 = vsyncpa [#allocation4], 1
    %s500 = scalar_lea.sflag [#allocation4], 1
    %501 = vsyncpa %s500, 1
    %502 = vsyncpa [#allocation7], 1
    %503 = vsyncpa [#allocation5], 1
    %s504 = scalar_lea.sflag [#allocation5], 1
    %505 = vsyncpa %s504, 1

</llo_original>
